<compile_context>
chip_gen: v7x
topology: tpu7x:2x2x1
jax: 0.10.0
libtpu: 0.0.40
codegen_flags: <defaults>
</compile_context>

<pallas_src>
import jax
import jax.numpy as jnp
from jax.experimental import pallas as pl
from jax.experimental.pallas import tpu as pltpu

KERNEL_SIZES = (2, 5, 10)
NEG_INF = -1e30


def textcnn_kernel(x_ref, wconv_ref, bconv_ref, mask_ref, wf_ref, bf_ref, out_ref):
    # x_ref:     (TILE_B, L + k_max - 1, E)  bf16 embeddings (seq padded by k_max - 1 ids)
    # wconv_ref: (k_max, E, 3C)              bf16 per-tap conv weight slabs (zero cols for j>=k)
    # bconv_ref: (1, 3C) f32, mask_ref: (L, 3C) f32 (-1e30 at invalid positions)
    # wf_ref:    (3C, NC_pad) bf16, bf_ref: (1, NC_pad) f32 (-1e30 bias on padded classes)
    tile_b, lp, e = x_ref.shape
    k_max, _, c3 = wconv_ref.shape
    L = lp - k_max + 1

    # Tap-accumulation conv: one small bf16 MXU dot per tap, f32 accumulate.
    acc = jnp.zeros((tile_b * L, c3), jnp.float32)
    for j in range(k_max):  # static python loop, k_max = 10
        xj = x_ref[:, j:j + L, :].reshape(tile_b * L, e)          # bf16, static ref slice
        acc = acc + jnp.dot(xj, wconv_ref[j], preferred_element_type=jnp.float32)

    # f32 epilogue: bias + tanh, mask invalid tail positions, per-branch maxpool.
    act = jnp.tanh(acc + bconv_ref[...])
    act = act.reshape(tile_b, L, c3) + mask_ref[...]
    feat = jnp.max(act, axis=1)                                   # (TILE_B, 3C)

    # TODO(synk): nn.Dropout is identity at inference; training-mode random mask not implemented.
    y = jnp.dot(feat.astype(jnp.bfloat16), wf_ref[...],
                preferred_element_type=jnp.float32) + bf_ref[...]  # (TILE_B, NC_pad)

    # log_softmax over classes (padded class columns sit at ~-1e30 and contribute 0 to the sum).
    m = jnp.max(y, axis=1, keepdims=True)
    lse = jnp.log(jnp.sum(jnp.exp(y - m), axis=1, keepdims=True))
    out_ref[...] = y - m - lse


def _choose_tile_b(B, L, target_m=512, min_steps=4):
    """Per-step batch tile.

    - Fill the MXU M dim (tile_b * L ~ target_m) to amortize ~0.35us per-grid-step overhead.
    - Keep >= min_steps grid steps when the batch allows it (v7x shards the 'parallel' axis
      across 2 TensorCores; each core needs >=2 steps for double-buffered pipelining).
    - tile_b is either the whole batch (single block == full array) or a multiple of 8 so the
      output block's second-to-last dim satisfies the (8, 128) tiling constraint.
    """
    if B * L <= target_m or B <= 8:
        return B
    tile = max(8, min(B, pl.cdiv(target_m, L)) // 8 * 8)
    while tile > 8 and pl.cdiv(B, tile) < min_steps:
        tile = max(8, (tile // 2) // 8 * 8)
    return tile


def _pack_params(params, L, nc_pad):
    """Host-side layout: per-tap conv weight slabs, fused bias, position mask, padded fc."""
    k_max = max(KERNEL_SIZES)
    C, _, E = params[0][0].shape
    c3 = len(KERNEL_SIZES) * C

    w_taps = jnp.zeros((k_max, E, c3), jnp.float32)               # (k_max, E, 3C)
    b_cols, m_cols = [], []
    pos = jnp.arange(L)[:, None]                                  # (L, 1)
    for idx, ((w, b), k) in enumerate(zip(params[:len(KERNEL_SIZES)], KERNEL_SIZES)):
        w_t = jnp.transpose(w, (1, 2, 0))                         # (k, E, C)
        w_taps = w_taps.at[:k, :, idx * C:(idx + 1) * C].set(w_t)  # taps j>=k stay zero
        b_cols.append(b)                                          # (1, C)
        valid = (pos <= (L - k)).astype(jnp.float32)              # (L, 1)
        m_cols.append(jnp.broadcast_to((1.0 - valid) * NEG_INF, (L, C)))

    wf, bf = params[len(KERNEL_SIZES)]                            # (NC, 3C), (1, NC)
    nc = wf.shape[0]
    w_conv = w_taps.astype(jnp.bfloat16)                          # (k_max, E, 3C)
    b_conv = jnp.concatenate(b_cols, axis=1).astype(jnp.float32)  # (1, 3C)
    mask = jnp.concatenate(m_cols, axis=1)                        # (L, 3C)
    wf_t = jnp.zeros((c3, nc_pad), jnp.float32).at[:, :nc].set(wf.T).astype(jnp.bfloat16)
    bf_p = jnp.full((1, nc_pad), NEG_INF, jnp.float32).at[:, :nc].set(bf[0])
    return w_conv, b_conv, mask, wf_t, bf_p


def textcnn_forward(tokens, lm, params, pad_id=0):
    B, L = tokens.shape
    E = lm.shape[1]
    k_max = max(KERNEL_SIZES)
    assert L >= k_max, "fixed_length must be >= max kernel size (else a branch is fully masked)"

    nc = params[len(KERNEL_SIZES)][1].shape[1]
    nc_pad = pl.cdiv(nc, 128) * 128                               # lane-dense output slab

    w_conv, b_conv, mask, wf_t, bf = _pack_params(params, L, nc_pad)

    tile_b = _choose_tile_b(B, L)
    b_pad = pl.cdiv(B, tile_b) * tile_b

    # Pad the int32 token ids (cheap) instead of the bf16 embedding tensor (full HBM round trip).
    # Padded-position embeddings only ever hit zero weight taps or -1e30-masked positions.
    # TODO(synk): embedding gather stays in XLA; fusing it (pl.ANY + scalar-prefetched ids +
    # manual DMA row gather) would remove the materialized (b_pad, L+9, E) activation.
    tok = jnp.pad(tokens, ((0, b_pad - B), (0, k_max - 1)), constant_values=pad_id)
    x = lm[tok].astype(jnp.bfloat16)                              # (b_pad, L + k_max - 1, E)

    def full_spec(arr):
        return pl.BlockSpec(arr.shape, lambda b, _n=arr.ndim: (0,) * _n)

    out = pl.pallas_call(
        textcnn_kernel,
        out_shape=jax.ShapeDtypeStruct((b_pad, nc_pad), jnp.float32),
        grid=(b_pad // tile_b,),
        in_specs=[
            pl.BlockSpec((tile_b, L + k_max - 1, E), lambda b: (b, 0, 0)),
            full_spec(w_conv),
            full_spec(b_conv),
            full_spec(mask),
            full_spec(wf_t),
            full_spec(bf),
        ],
        out_specs=pl.BlockSpec((tile_b, nc_pad), lambda b: (b, 0)),
        compiler_params=pltpu.CompilerParams(
            dimension_semantics=("parallel",),
            vmem_limit_bytes=32 * 1024 * 1024,
        ),
    )(x, w_conv, b_conv, mask, wf_t, bf)
    return out[:B, :nc]


if __name__ == "__main__":
    # Small shapes consistent with the module's forward:
    # vocab V, embed E, fixed_length L, kernel_num C, 15 output classes.
    B, L, E, C, V, NC = 2, 16, 32, 16, 20, 15

    key = jax.random.PRNGKey(0)
    keys = jax.random.split(key, 10)

    lm = jax.random.normal(keys[0], (V, E), jnp.float32)          # pretrained embedding table
    tokens = jax.random.randint(keys[1], (B, L), 0, V)            # token ids

    params = []
    for i, k in enumerate(KERNEL_SIZES):
        w = jax.random.normal(keys[2 + 2 * i], (C, k, E), jnp.float32) * 0.1
        b = jax.random.normal(keys[3 + 2 * i], (1, C), jnp.float32) * 0.1
        params.append((w, b))
    wf = jax.random.normal(keys[8], (NC, len(KERNEL_SIZES) * C), jnp.float32) * 0.1
    bf = jax.random.normal(keys[9], (1, NC), jnp.float32) * 0.1
    params.append((wf, bf))

    out = jax.block_until_ready(textcnn_forward(tokens, lm, params))

    # Pure-JAX reference (module semantics). `quant` optionally applies the same bf16 input
    # rounding as the kernel's MXU path so we can check tightly against a matched reference.
    def reference(emb_r, conv_ws, wf_r, quant=lambda a: a):
        feats = []
        for (w, b), k in zip(conv_ws, KERNEL_SIZES):
            Lo = L - k + 1
            windows = jnp.stack([emb_r[:, j:j + Lo, :] for j in range(k)], axis=2)  # (B,Lo,k,E)
            conv = jnp.einsum('blke,cke->blc', quant(windows), quant(w),
                              precision=jax.lax.Precision.HIGHEST) + b
            feats.append(jnp.max(jnp.tanh(conv), axis=1))
        feat = jnp.concatenate(feats, axis=1)
        y = jnp.dot(quant(feat), quant(wf_r).T,
                    precision=jax.lax.Precision.HIGHEST) + params[3][1]
        return jax.nn.log_softmax(y, axis=1)

    rnd = lambda a: a.astype(jnp.bfloat16).astype(jnp.float32)
    emb_f32 = lm[tokens]
    ref_f32 = reference(emb_f32, params[:3], params[3][0])                 # exact f32 semantics
    ref_bf16 = reference(emb_f32, params[:3], params[3][0], quant=rnd)     # bf16-matched

    assert out.shape == (B, NC)
    assert jnp.allclose(out, ref_bf16, atol=5e-3, rtol=5e-3), jnp.max(jnp.abs(out - ref_bf16))
    assert jnp.allclose(out, ref_f32, atol=3e-2, rtol=3e-2), jnp.max(jnp.abs(out - ref_f32))
    print("KERNEL_OK")
</pallas_src>

<mosaic_0001>
module attributes {stable_mosaic.version = 11 : i64} {
  func.func @textcnn_kernel(%arg0: i32, %arg1: memref<2x25x32xbf16, #tpu.memory_space<vmem>>, %arg2: memref<10x32x48xbf16, #tpu.memory_space<vmem>>, %arg3: memref<1x48xf32, #tpu.memory_space<vmem>>, %arg4: memref<16x48xf32, #tpu.memory_space<vmem>>, %arg5: memref<48x128xbf16, #tpu.memory_space<vmem>>, %arg6: memref<1x128xf32, #tpu.memory_space<vmem>>, %arg7: memref<2x128xf32, #tpu.memory_space<vmem>>) attributes {dimension_semantics = [#tpu.dimension_semantics<parallel>], iteration_bounds = array<i64: 1>, scalar_prefetch = 0 : i64, scratch_operands = 0 : i64, tpu.core_type = #tpu.core_type<tc>, window_params = [{transform_indices = @transform_0, window_bounds = array<i64: 2, 25, 32>}, {pipeline_mode = #tpu.pipeline_mode<synchronous>, transform_indices = @transform_1, window_bounds = array<i64: 10, 32, 48>}, {pipeline_mode = #tpu.pipeline_mode<synchronous>, transform_indices = @transform_2, window_bounds = array<i64: 1, 48>}, {pipeline_mode = #tpu.pipeline_mode<synchronous>, transform_indices = @transform_3, window_bounds = array<i64: 16, 48>}, {pipeline_mode = #tpu.pipeline_mode<synchronous>, transform_indices = @transform_4, window_bounds = array<i64: 48, 128>}, {pipeline_mode = #tpu.pipeline_mode<synchronous>, transform_indices = @transform_5, window_bounds = array<i64: 1, 128>}, {transform_indices = @transform_6, window_bounds = array<i64: 2, 128>}]} {
    %cst = arith.constant 0.000000e+00 : f32
    %0 = vector.broadcast %cst : f32 to vector<32x48xf32>
    %c0 = arith.constant 0 : index
    %c0_0 = arith.constant 0 : index
    %c0_1 = arith.constant 0 : index
    %1 = vector.load %arg1[%c0, %c0_0, %c0_1] : memref<2x25x32xbf16, #tpu.memory_space<vmem>>, vector<2x16x32xbf16>
    %2 = vector.shape_cast %1 : vector<2x16x32xbf16> to vector<32x32xbf16>
    %c0_2 = arith.constant 0 : index
    %c0_3 = arith.constant 0 : index
    %c0_4 = arith.constant 0 : index
    %3 = vector.load %arg2[%c0_2, %c0_3, %c0_4] : memref<10x32x48xbf16, #tpu.memory_space<vmem>>, vector<1x32x48xbf16>
    %4 = vector.shape_cast %3 : vector<1x32x48xbf16> to vector<32x48xbf16>
    %cst_5 = arith.constant dense<0.000000e+00> : vector<32x48xf32>
    %5 = tpu.matmul %2, %4, %cst_5 {dimension_numbers = #tpu.dot_dimension_numbers<[1], [0], [0], [1], [0, 0, 1, 1], [], []>} : vector<32x32xbf16>, vector<32x48xbf16>, vector<32x48xf32> -> vector<32x48xf32>
    %6 = arith.addf %0, %5 : vector<32x48xf32>
    %c0_6 = arith.constant 0 : index
    %c1 = arith.constant 1 : index
    %c0_7 = arith.constant 0 : index
    %7 = vector.load %arg1[%c0_6, %c1, %c0_7] : memref<2x25x32xbf16, #tpu.memory_space<vmem>>, vector<2x16x32xbf16>
    %8 = vector.shape_cast %7 : vector<2x16x32xbf16> to vector<32x32xbf16>
    %c1_8 = arith.constant 1 : index
    %c0_9 = arith.constant 0 : index
    %c0_10 = arith.constant 0 : index
    %9 = vector.load %arg2[%c1_8, %c0_9, %c0_10] : memref<10x32x48xbf16, #tpu.memory_space<vmem>>, vector<1x32x48xbf16>
    %10 = vector.shape_cast %9 : vector<1x32x48xbf16> to vector<32x48xbf16>
    %cst_11 = arith.constant dense<0.000000e+00> : vector<32x48xf32>
    %11 = tpu.matmul %8, %10, %cst_11 {dimension_numbers = #tpu.dot_dimension_numbers<[1], [0], [0], [1], [0, 0, 1, 1], [], []>} : vector<32x32xbf16>, vector<32x48xbf16>, vector<32x48xf32> -> vector<32x48xf32>
    %12 = arith.addf %6, %11 : vector<32x48xf32>
    %c0_12 = arith.constant 0 : index
    %c2 = arith.constant 2 : index
    %c0_13 = arith.constant 0 : index
    %13 = vector.load %arg1[%c0_12, %c2, %c0_13] : memref<2x25x32xbf16, #tpu.memory_space<vmem>>, vector<2x16x32xbf16>
    %14 = vector.shape_cast %13 : vector<2x16x32xbf16> to vector<32x32xbf16>
    %c2_14 = arith.constant 2 : index
    %c0_15 = arith.constant 0 : index
    %c0_16 = arith.constant 0 : index
    %15 = vector.load %arg2[%c2_14, %c0_15, %c0_16] : memref<10x32x48xbf16, #tpu.memory_space<vmem>>, vector<1x32x48xbf16>
    %16 = vector.shape_cast %15 : vector<1x32x48xbf16> to vector<32x48xbf16>
    %cst_17 = arith.constant dense<0.000000e+00> : vector<32x48xf32>
    %17 = tpu.matmul %14, %16, %cst_17 {dimension_numbers = #tpu.dot_dimension_numbers<[1], [0], [0], [1], [0, 0, 1, 1], [], []>} : vector<32x32xbf16>, vector<32x48xbf16>, vector<32x48xf32> -> vector<32x48xf32>
    %18 = arith.addf %12, %17 : vector<32x48xf32>
    %c0_18 = arith.constant 0 : index
    %c3 = arith.constant 3 : index
    %c0_19 = arith.constant 0 : index
    %19 = vector.load %arg1[%c0_18, %c3, %c0_19] : memref<2x25x32xbf16, #tpu.memory_space<vmem>>, vector<2x16x32xbf16>
    %20 = vector.shape_cast %19 : vector<2x16x32xbf16> to vector<32x32xbf16>
    %c3_20 = arith.constant 3 : index
    %c0_21 = arith.constant 0 : index
    %c0_22 = arith.constant 0 : index
    %21 = vector.load %arg2[%c3_20, %c0_21, %c0_22] : memref<10x32x48xbf16, #tpu.memory_space<vmem>>, vector<1x32x48xbf16>
    %22 = vector.shape_cast %21 : vector<1x32x48xbf16> to vector<32x48xbf16>
    %cst_23 = arith.constant dense<0.000000e+00> : vector<32x48xf32>
    %23 = tpu.matmul %20, %22, %cst_23 {dimension_numbers = #tpu.dot_dimension_numbers<[1], [0], [0], [1], [0, 0, 1, 1], [], []>} : vector<32x32xbf16>, vector<32x48xbf16>, vector<32x48xf32> -> vector<32x48xf32>
    %24 = arith.addf %18, %23 : vector<32x48xf32>
    %c0_24 = arith.constant 0 : index
    %c4 = arith.constant 4 : index
    %c0_25 = arith.constant 0 : index
    %25 = vector.load %arg1[%c0_24, %c4, %c0_25] : memref<2x25x32xbf16, #tpu.memory_space<vmem>>, vector<2x16x32xbf16>
    %26 = vector.shape_cast %25 : vector<2x16x32xbf16> to vector<32x32xbf16>
    %c4_26 = arith.constant 4 : index
    %c0_27 = arith.constant 0 : index
    %c0_28 = arith.constant 0 : index
    %27 = vector.load %arg2[%c4_26, %c0_27, %c0_28] : memref<10x32x48xbf16, #tpu.memory_space<vmem>>, vector<1x32x48xbf16>
    %28 = vector.shape_cast %27 : vector<1x32x48xbf16> to vector<32x48xbf16>
    %cst_29 = arith.constant dense<0.000000e+00> : vector<32x48xf32>
    %29 = tpu.matmul %26, %28, %cst_29 {dimension_numbers = #tpu.dot_dimension_numbers<[1], [0], [0], [1], [0, 0, 1, 1], [], []>} : vector<32x32xbf16>, vector<32x48xbf16>, vector<32x48xf32> -> vector<32x48xf32>
    %30 = arith.addf %24, %29 : vector<32x48xf32>
    %c0_30 = arith.constant 0 : index
    %c5 = arith.constant 5 : index
    %c0_31 = arith.constant 0 : index
    %31 = vector.load %arg1[%c0_30, %c5, %c0_31] : memref<2x25x32xbf16, #tpu.memory_space<vmem>>, vector<2x16x32xbf16>
    %32 = vector.shape_cast %31 : vector<2x16x32xbf16> to vector<32x32xbf16>
    %c5_32 = arith.constant 5 : index
    %c0_33 = arith.constant 0 : index
    %c0_34 = arith.constant 0 : index
    %33 = vector.load %arg2[%c5_32, %c0_33, %c0_34] : memref<10x32x48xbf16, #tpu.memory_space<vmem>>, vector<1x32x48xbf16>
    %34 = vector.shape_cast %33 : vector<1x32x48xbf16> to vector<32x48xbf16>
    %cst_35 = arith.constant dense<0.000000e+00> : vector<32x48xf32>
    %35 = tpu.matmul %32, %34, %cst_35 {dimension_numbers = #tpu.dot_dimension_numbers<[1], [0], [0], [1], [0, 0, 1, 1], [], []>} : vector<32x32xbf16>, vector<32x48xbf16>, vector<32x48xf32> -> vector<32x48xf32>
    %36 = arith.addf %30, %35 : vector<32x48xf32>
    %c0_36 = arith.constant 0 : index
    %c6 = arith.constant 6 : index
    %c0_37 = arith.constant 0 : index
    %37 = vector.load %arg1[%c0_36, %c6, %c0_37] : memref<2x25x32xbf16, #tpu.memory_space<vmem>>, vector<2x16x32xbf16>
    %38 = vector.shape_cast %37 : vector<2x16x32xbf16> to vector<32x32xbf16>
    %c6_38 = arith.constant 6 : index
    %c0_39 = arith.constant 0 : index
    %c0_40 = arith.constant 0 : index
    %39 = vector.load %arg2[%c6_38, %c0_39, %c0_40] : memref<10x32x48xbf16, #tpu.memory_space<vmem>>, vector<1x32x48xbf16>
    %40 = vector.shape_cast %39 : vector<1x32x48xbf16> to vector<32x48xbf16>
    %cst_41 = arith.constant dense<0.000000e+00> : vector<32x48xf32>
    %41 = tpu.matmul %38, %40, %cst_41 {dimension_numbers = #tpu.dot_dimension_numbers<[1], [0], [0], [1], [0, 0, 1, 1], [], []>} : vector<32x32xbf16>, vector<32x48xbf16>, vector<32x48xf32> -> vector<32x48xf32>
    %42 = arith.addf %36, %41 : vector<32x48xf32>
    %c0_42 = arith.constant 0 : index
    %c7 = arith.constant 7 : index
    %c0_43 = arith.constant 0 : index
    %43 = vector.load %arg1[%c0_42, %c7, %c0_43] : memref<2x25x32xbf16, #tpu.memory_space<vmem>>, vector<2x16x32xbf16>
    %44 = vector.shape_cast %43 : vector<2x16x32xbf16> to vector<32x32xbf16>
    %c7_44 = arith.constant 7 : index
    %c0_45 = arith.constant 0 : index
    %c0_46 = arith.constant 0 : index
    %45 = vector.load %arg2[%c7_44, %c0_45, %c0_46] : memref<10x32x48xbf16, #tpu.memory_space<vmem>>, vector<1x32x48xbf16>
    %46 = vector.shape_cast %45 : vector<1x32x48xbf16> to vector<32x48xbf16>
    %cst_47 = arith.constant dense<0.000000e+00> : vector<32x48xf32>
    %47 = tpu.matmul %44, %46, %cst_47 {dimension_numbers = #tpu.dot_dimension_numbers<[1], [0], [0], [1], [0, 0, 1, 1], [], []>} : vector<32x32xbf16>, vector<32x48xbf16>, vector<32x48xf32> -> vector<32x48xf32>
    %48 = arith.addf %42, %47 : vector<32x48xf32>
    %c0_48 = arith.constant 0 : index
    %c8 = arith.constant 8 : index
    %c0_49 = arith.constant 0 : index
    %49 = vector.load %arg1[%c0_48, %c8, %c0_49] : memref<2x25x32xbf16, #tpu.memory_space<vmem>>, vector<2x16x32xbf16>
    %50 = vector.shape_cast %49 : vector<2x16x32xbf16> to vector<32x32xbf16>
    %c8_50 = arith.constant 8 : index
    %c0_51 = arith.constant 0 : index
    %c0_52 = arith.constant 0 : index
    %51 = vector.load %arg2[%c8_50, %c0_51, %c0_52] : memref<10x32x48xbf16, #tpu.memory_space<vmem>>, vector<1x32x48xbf16>
    %52 = vector.shape_cast %51 : vector<1x32x48xbf16> to vector<32x48xbf16>
    %cst_53 = arith.constant dense<0.000000e+00> : vector<32x48xf32>
    %53 = tpu.matmul %50, %52, %cst_53 {dimension_numbers = #tpu.dot_dimension_numbers<[1], [0], [0], [1], [0, 0, 1, 1], [], []>} : vector<32x32xbf16>, vector<32x48xbf16>, vector<32x48xf32> -> vector<32x48xf32>
    %54 = arith.addf %48, %53 : vector<32x48xf32>
    %c0_54 = arith.constant 0 : index
    %c9 = arith.constant 9 : index
    %c0_55 = arith.constant 0 : index
    %55 = vector.load %arg1[%c0_54, %c9, %c0_55] : memref<2x25x32xbf16, #tpu.memory_space<vmem>>, vector<2x16x32xbf16>
    %56 = vector.shape_cast %55 : vector<2x16x32xbf16> to vector<32x32xbf16>
    %c9_56 = arith.constant 9 : index
    %c0_57 = arith.constant 0 : index
    %c0_58 = arith.constant 0 : index
    %57 = vector.load %arg2[%c9_56, %c0_57, %c0_58] : memref<10x32x48xbf16, #tpu.memory_space<vmem>>, vector<1x32x48xbf16>
    %58 = vector.shape_cast %57 : vector<1x32x48xbf16> to vector<32x48xbf16>
    %cst_59 = arith.constant dense<0.000000e+00> : vector<32x48xf32>
    %59 = tpu.matmul %56, %58, %cst_59 {dimension_numbers = #tpu.dot_dimension_numbers<[1], [0], [0], [1], [0, 0, 1, 1], [], []>} : vector<32x32xbf16>, vector<32x48xbf16>, vector<32x48xf32> -> vector<32x48xf32>
    %60 = arith.addf %54, %59 : vector<32x48xf32>
    %c0_60 = arith.constant 0 : index
    %c0_61 = arith.constant 0 : index
    %61 = vector.load %arg3[%c0_60, %c0_61] : memref<1x48xf32, #tpu.memory_space<vmem>>, vector<1x48xf32>
    %62 = vector.broadcast %61 : vector<1x48xf32> to vector<32x48xf32>
    %63 = arith.addf %60, %62 : vector<32x48xf32>
    %64 = math.tanh %63 : vector<32x48xf32>
    %65 = vector.shape_cast %64 : vector<32x48xf32> to vector<2x16x48xf32>
    %c0_62 = arith.constant 0 : index
    %c0_63 = arith.constant 0 : index
    %66 = vector.load %arg4[%c0_62, %c0_63] : memref<16x48xf32, #tpu.memory_space<vmem>>, vector<16x48xf32>
    %67 = vector.shape_cast %66 : vector<16x48xf32> to vector<1x16x48xf32>
    %68 = vector.broadcast %67 : vector<1x16x48xf32> to vector<2x16x48xf32>
    %69 = arith.addf %65, %68 : vector<2x16x48xf32>
    %cst_64 = arith.constant dense<0xFF800000> : vector<2x48xf32>
    %70 = vector.multi_reduction <maximumf>, %69, %cst_64 [1] : vector<2x16x48xf32> to vector<2x48xf32>
    %71 = arith.truncf %70 : vector<2x48xf32> to vector<2x48xbf16>
    %c0_65 = arith.constant 0 : index
    %c0_66 = arith.constant 0 : index
    %72 = vector.load %arg5[%c0_65, %c0_66] : memref<48x128xbf16, #tpu.memory_space<vmem>>, vector<48x128xbf16>
    %cst_67 = arith.constant dense<0.000000e+00> : vector<2x128xf32>
    %73 = tpu.matmul %71, %72, %cst_67 {dimension_numbers = #tpu.dot_dimension_numbers<[1], [0], [0], [1], [0, 0, 1, 1], [], []>} : vector<2x48xbf16>, vector<48x128xbf16>, vector<2x128xf32> -> vector<2x128xf32>
    %c0_68 = arith.constant 0 : index
    %c0_69 = arith.constant 0 : index
    %74 = vector.load %arg6[%c0_68, %c0_69] : memref<1x128xf32, #tpu.memory_space<vmem>>, vector<1x128xf32>
    %75 = vector.broadcast %74 : vector<1x128xf32> to vector<2x128xf32>
    %76 = arith.addf %73, %75 : vector<2x128xf32>
    %cst_70 = arith.constant dense<0xFF800000> : vector<2xf32>
    %77 = vector.multi_reduction <maximumf>, %76, %cst_70 [1] : vector<2x128xf32> to vector<2xf32>
    %78 = vector.shape_cast %77 : vector<2xf32> to vector<2x1xf32>
    %79 = vector.broadcast %78 : vector<2x1xf32> to vector<2x128xf32>
    %80 = arith.subf %76, %79 : vector<2x128xf32>
    %81 = math.exp %80 : vector<2x128xf32>
    %cst_71 = arith.constant dense<0.000000e+00> : vector<2xf32>
    %82 = vector.multi_reduction <add>, %81, %cst_71 [1] : vector<2x128xf32> to vector<2xf32>
    %83 = vector.shape_cast %82 : vector<2xf32> to vector<2x1xf32>
    %84 = math.log %83 : vector<2x1xf32>
    %85 = vector.broadcast %78 : vector<2x1xf32> to vector<2x128xf32>
    %86 = arith.subf %76, %85 : vector<2x128xf32>
    %87 = vector.broadcast %84 : vector<2x1xf32> to vector<2x128xf32>
    %88 = arith.subf %86, %87 : vector<2x128xf32>
    %c0_72 = arith.constant 0 : index
    %c0_73 = arith.constant 0 : index
    %89 = vector.load %arg7[%c0_72, %c0_73] : memref<2x128xf32, #tpu.memory_space<vmem>>, vector<2x128xf32>
    tpu.vector_store %arg7[%c0_72, %c0_73], %88 {strides = array<i32>} : memref<2x128xf32, #tpu.memory_space<vmem>>, vector<2x128xf32>,
    return
  }
  func.func @transform_0(%arg0: i32) -> (i32, i32, i32) {
    %c0_i32 = arith.constant 0 : i32
    %c0_i32_0 = arith.constant 0 : i32
    %c0_i32_1 = arith.constant 0 : i32
    return %arg0, %c0_i32, %c0_i32_0 : i32, i32, i32
  }
  func.func @transform_1(%arg0: i32) -> (i32, i32, i32) {
    %c0_i32 = arith.constant 0 : i32
    %c0_i32_0 = arith.constant 0 : i32
    %c0_i32_1 = arith.constant 0 : i32
    %c0_i32_2 = arith.constant 0 : i32
    return %c0_i32, %c0_i32_0, %c0_i32_1 : i32, i32, i32
  }
  func.func @transform_2(%arg0: i32) -> (i32, i32) {
    %c0_i32 = arith.constant 0 : i32
    %c0_i32_0 = arith.constant 0 : i32
    %c0_i32_1 = arith.constant 0 : i32
    return %c0_i32, %c0_i32_0 : i32, i32
  }
  func.func @transform_3(%arg0: i32) -> (i32, i32) {
    %c0_i32 = arith.constant 0 : i32
    %c0_i32_0 = arith.constant 0 : i32
    %c0_i32_1 = arith.constant 0 : i32
    return %c0_i32, %c0_i32_0 : i32, i32
  }
  func.func @transform_4(%arg0: i32) -> (i32, i32) {
    %c0_i32 = arith.constant 0 : i32
    %c0_i32_0 = arith.constant 0 : i32
    %c0_i32_1 = arith.constant 0 : i32
    return %c0_i32, %c0_i32_0 : i32, i32
  }
  func.func @transform_5(%arg0: i32) -> (i32, i32) {
    %c0_i32 = arith.constant 0 : i32
    %c0_i32_0 = arith.constant 0 : i32
    %c0_i32_1 = arith.constant 0 : i32
    return %c0_i32, %c0_i32_0 : i32, i32
  }
  func.func @transform_6(%arg0: i32) -> (i32, i32) {
    %c0_i32 = arith.constant 0 : i32
    %c0_i32_0 = arith.constant 0 : i32
    return %arg0, %c0_i32 : i32, i32
  }
}

</mosaic_0001>

<llo_original>
// kernel: tpu_custom_call.1
$region0: #{tpu_custom_call.1}
  #allocation0 [shape = 'u32[]', space=smem, size = 0x4, offset = 0x4, fixed_abs, tag = 'smem constant byte address 0x4 - core index']
  #allocation1 [shape = 'u32[144,128]{1,0:T(1,128)}', space=vmem, size = 0x12000, scoped, tag = 'internal scratch']
  %s0 = inlined_call_operand.vmem [shape: bf16[2,25,32], index: 0, kind: input, shape index: {}]
  %s1 = inlined_call_operand.hbm [shape: bf16[10,32,48], index: 1, kind: input, shape index: {}]
  %s2 = inlined_call_operand.vmem [shape: f32[1,48], index: 2, kind: input, shape index: {}]
  %s3 = inlined_call_operand.vmem [shape: f32[16,48], index: 3, kind: input, shape index: {}]
  %s4 = inlined_call_operand.vmem [shape: bf16[48,128], index: 4, kind: input, shape index: {}]
  %s5 = inlined_call_operand.vmem [shape: f32[1,128], index: 5, kind: input, shape index: {}]
  %s6 = inlined_call_operand.hbm [shape: f32[2,128], index: 6, kind: output, shape index: {}]
  %s7 = sld [smem:[#allocation0]]
  $region38: #{tpu_custom_call.1} parent=0
    _
  %s9 = ssub.s32 1, %s7
  %s10 = scalar_select 0, %s9, %s7
  $region1: #{tpu_custom_call.1} parent=0
    #allocation2 [shape = 'u8[81920]{0}', space=vmem, size = 0x14000, scoped, tag = 'input window, operand 1, single buffered']
    #allocation3 [shape = 's32[1]{0}', space=sflag, size = 0x4, scoped, tag = 'scoped memory for tpu_custom_call.1']
    #allocation4 [shape = 's32[1]{0}', space=sflag, size = 0x4, scoped, tag = 'scoped memory for tpu_custom_call.1']
    #allocation5 [shape = 'u8[1024]{0}', space=vmem, size = 0x400, scoped, tag = 'output window, operand 0, single buffered']
    %11 = vsyncpa [#allocation3], 0
    %12 = vsyncpa [#allocation4], 0
    // Predicated region
    $region2: #{tpu_custom_call.1} parent=1 // pred_check
      _
    $region3: #{tpu_custom_call.1} parent=1 // pred_check_branch
      %14 = sbr.rel (0) target = $region5
    $region4: #{tpu_custom_call.1} parent=1 // pred_region
      _
    $region5: #{tpu_custom_call.1} parent=1 // pred_fallthru
      _
    // Predicated region
    $region6: #{tpu_custom_call.1} parent=1 // pred_check
      _
    $region7: #{tpu_custom_call.1} parent=1 // pred_check_branch
      %16 = sbr.rel (0) target = $region9
    $region8: #{tpu_custom_call.1} parent=1 // pred_region
      %s18 = ssub.s32 2560, 2560
      %19 = vsyncadd [#allocation3], %s18
      %s20 = sshll.u32 [#allocation2], 4
      %s21 = int_to_ptr.vmem [resolvable:$true] %s20
      %26 = dma.hbm_to_vmem [thread:$0]  %s1, 2560, %s21, [#allocation3], 64, 64, 4
    $region9: #{tpu_custom_call.1} parent=1 // pred_fallthru
      _
    // Predicated region
    $region10: #{tpu_custom_call.1} parent=1 // pred_check
      _
    $region11: #{tpu_custom_call.1} parent=1 // pred_check_branch
      %28 = sbr.rel (0) target = $region13
    $region12: #{tpu_custom_call.1} parent=1 // pred_region
      _
    $region13: #{tpu_custom_call.1} parent=1 // pred_fallthru
      _
    // Predicated region
    $region14: #{tpu_custom_call.1} parent=1 // pred_check
      _
    $region15: #{tpu_custom_call.1} parent=1 // pred_check_branch
      %30 = sbr.rel (0) target = $region17
    $region16: #{tpu_custom_call.1} parent=1 // pred_region
      _
    $region17: #{tpu_custom_call.1} parent=1 // pred_fallthru
      _
    // Predicated region
    $region18: #{tpu_custom_call.1} parent=1 // pred_check
      _
    $region19: #{tpu_custom_call.1} parent=1 // pred_check_branch
      %32 = sbr.rel (0) target = $region21
    $region20: #{tpu_custom_call.1} parent=1 // pred_region
      _
    $region21: #{tpu_custom_call.1} parent=1 // pred_fallthru
      _
    // Predicated region
    $region22: #{tpu_custom_call.1} parent=1 // pred_check
      _
    $region23: #{tpu_custom_call.1} parent=1 // pred_check_branch
      %34 = sbr.rel (0) target = $region25
    $region24: #{tpu_custom_call.1} parent=1 // pred_region
      _
    $region25: #{tpu_custom_call.1} parent=1 // pred_fallthru
      _
    // Predicated region
    $region26: #{tpu_custom_call.1} parent=1 // pred_check
      _
    $region27: #{tpu_custom_call.1} parent=1 // pred_check_branch
      %36 = sbr.rel (0) target = $region29
    $region28: #{tpu_custom_call.1} parent=1 // pred_region
      %37 = dma.done [#allocation3], 2560
    $region29: #{tpu_custom_call.1} parent=1 // pred_fallthru
      _
    %v39 = vld [vmem:[%s0] sm:$0xf]
    %v40 = vld [vmem:[%s0 + $0x4] sm:$0xf]
    %v41 = vld [vmem:[%s0 + $0x10] sm:$0xf]
    %v42 = vld [vmem:[%s0 + $0x14] sm:$0xf]
    %v43 = vld [vmem:[#allocation2] sm:$0xf]
    %v44 = vld [vmem:[#allocation2 + $0x4] sm:$0xf]
    %v45 = vld [vmem:[#allocation2 + $0x8] sm:$0xf]
    %v46 = vld [vmem:[#allocation2 + $0xc] sm:$0xf]
    %v47 = vld [vmem:[%s0 + $0x8] sm:$0x1]
    %v48 = vld [vmem:[%s0 + $0x18] sm:$0x1]
    %vm49 = vsmask.f32 3328
    %vm50 = vsmask.f32 7440
    %vm51 = vmor %vm49, %vm50
    %v53 = vshrl.u32 %v39, 16
    %v55 = vrot.slane %v53, 4
    %v56 = vshll.u32 %v39, 16
    %v58 = vrot.slane %v56, 5
    %v59 = vor.u32 %v55, %v58
    %v60 = vrot.slane %v59, 4
    %v62 = vshll.u32 %v40, 16
    %v64 = vrot.slane %v62, 5
    %v65 = vsel %vm51, %v60, %v64
    %v66 = vshrl.u32 %v40, 16
    %v68 = vrot.slane %v66, 4
    %v69 = vor.u32 %v68, %v64
    %v70 = vrot.slane %v69, 4
    %v72 = vshll.u32 %v47, 16
    %v74 = vrot.slane %v72, 5
    %v75 = vsel %vm51, %v70, %v74
    %v77 = vshrl.u32 %v41, 16
    %v79 = vrot.slane %v77, 4
    %v80 = vshll.u32 %v41, 16
    %v82 = vrot.slane %v80, 5
    %v83 = vor.u32 %v79, %v82
    %v84 = vrot.slane %v83, 4
    %v86 = vshll.u32 %v42, 16
    %v88 = vrot.slane %v86, 5
    %v89 = vsel %vm51, %v84, %v88
    %v90 = vshrl.u32 %v42, 16
    %v92 = vrot.slane %v90, 4
    %v93 = vor.u32 %v92, %v88
    %v94 = vrot.slane %v93, 4
    %v96 = vshll.u32 %v48, 16
    %v98 = vrot.slane %v96, 5
    %v99 = vsel %vm51, %v94, %v98
    %s100 = scalar_lea.vmem [#allocation2], 16
    %v101 = vld [vmem:[%s100] sm:$0xf]
    %v102 = vld [vmem:[%s100 + $0x4] sm:$0xf]
    %v103 = vld [vmem:[%s100 + $0x8] sm:$0xf]
    %v104 = vld [vmem:[%s100 + $0xc] sm:$0xf]
    %v105 = vunpack.c.l.b16 %v65
    %v106 = vunpack.c.l.b16 %v75
    %v107 = vunpack.c.l.b16 %v89
    %v108 = vunpack.c.l.b16 %v99
    %v109 = vpack.c.b16 %v106, %v105
    %v110 = vpack.c.b16 %v108, %v107
    %v115 = vunpack.c.l.b16 %v101
    %v116 = vunpack.c.l.b16 %v102
    %v117 = vunpack.c.l.b16 %v103
    %v118 = vunpack.c.l.b16 %v104
    %v119 = vpack.c.b16 %v116, %v115
    %v120 = vpack.c.b16 %v118, %v117
    %vm123 = vcmask 261120
    %v125 = vsel %vm123, %v109, 0
    %v128 = vsel %vm123, %v110, 0
    %130 = vmatprep.subr.bf16.mxu0 0
    %131 = vmatpush1.bf16.msra.mxu0 %v119
    %132 = vmatprep.subr.bf16.mxu0 0
    %133 = vmatpush1.bf16.msra.mxu0 %v120
    %134 = vmatprep.subr.bf16.mxu0 0
    %135 = vmatpush1.bf16.msra.mxu0 0
    %136 = vmatprep.subr.bf16.mxu0 0
    %137 = vmatpush1.bf16.msra.mxu0 0
    %138 = vmatprep.subr.bf16.mxu0 0
    %139 = vmatpush1.bf16.msra.mxu0 0
    %140 = vmatprep.subr.bf16.mxu0 0
    %141 = vmatpush1.bf16.msra.mxu0 0
    %142 = vmatprep.subr.bf16.mxu0 0
    %143 = vmatpush1.bf16.msra.mxu0 0
    %144 = vmatprep.subr.bf16.mxu0 0
    %145 = vmatpush1.bf16.msra.mxu0 0
    %146 = vmatprep.subr.bf16.mxu0 0
    %147 = vmatpush1.bf16.msra.mxu0 0
    %148 = vmatprep.subr.bf16.mxu0 0
    %149 = vmatpush1.bf16.msra.mxu0 0
    %150 = vmatprep.subr.bf16.mxu0 0
    %151 = vmatpush1.bf16.msra.mxu0 0
    %152 = vmatprep.subr.bf16.mxu0 0
    %153 = vmatpush1.bf16.msra.mxu0 0
    %154 = vmatprep.subr.bf16.mxu0 0
    %155 = vmatpush1.bf16.msra.mxu0 0
    %156 = vmatprep.subr.bf16.mxu0 0
    %157 = vmatpush1.bf16.msra.mxu0 0
    %158 = vmatprep.subr.bf16.mxu0 0
    %159 = vmatpush1.bf16.msra.mxu0 0
    %160 = vmatprep.subr.bf16.mxu0 0
    %161 = vmatpush1.bf16.msra.mxu0 0
    %162 = vmatprep.mubr.bf16.mxu0 0
    %163 = vmatmul.mubr.bf16.gmra.mrb[0].mxu0 %v125
    %v164 = vpop.f32.mrb[0].mxu0
    %v165 = vadd.f32 0.0, %v164
    %v166 = vpop.f32.mrb[0].mxu0
    %v167 = vpop.f32.mrb[0].mxu0
    %v168 = vadd.f32 0.0, %v167
    %v169 = vpop.f32.mrb[0].mxu0
    %170 = vmatprep.mubr.bf16.mxu0 0
    %171 = vmatmul.mubr.bf16.gmra.mrb[0].mxu0 %v128
    %v172 = vpop.f32.mrb[0].mxu0
    %v173 = vadd.f32 0.0, %v172
    %v174 = vpop.f32.mrb[0].mxu0
    %v175 = vpop.f32.mrb[0].mxu0
    %v176 = vadd.f32 0.0, %v175
    %v177 = vpop.f32.mrb[0].mxu0
    %178 = vdwg.mxu0
    %v183 = vunpack.c.l.b16 %v39
    %v184 = vunpack.c.l.b16 %v40
    %v185 = vunpack.c.l.b16 %v41
    %v186 = vunpack.c.l.b16 %v42
    %v187 = vpack.c.b16 %v184, %v183
    %v188 = vpack.c.b16 %v186, %v185
    %v193 = vunpack.c.l.b16 %v43
    %v194 = vunpack.c.l.b16 %v44
    %v195 = vunpack.c.l.b16 %v45
    %v196 = vunpack.c.l.b16 %v46
    %v197 = vpack.c.b16 %v194, %v193
    %v198 = vpack.c.b16 %v196, %v195
    %v202 = vsel %vm123, %v187, 0
    %v205 = vsel %vm123, %v188, 0
    %207 = vmatprep.subr.bf16.mxu0 0
    %208 = vmatpush1.bf16.msra.mxu0 %v197
    %209 = vmatprep.subr.bf16.mxu0 0
    %210 = vmatpush1.bf16.msra.mxu0 %v198
    %211 = vmatprep.subr.bf16.mxu0 0
    %212 = vmatpush1.bf16.msra.mxu0 0
    %213 = vmatprep.subr.bf16.mxu0 0
    %214 = vmatpush1.bf16.msra.mxu0 0
    %215 = vmatprep.subr.bf16.mxu0 0
    %216 = vmatpush1.bf16.msra.mxu0 0
    %217 = vmatprep.subr.bf16.mxu0 0
    %218 = vmatpush1.bf16.msra.mxu0 0
    %219 = vmatprep.subr.bf16.mxu0 0
    %220 = vmatpush1.bf16.msra.mxu0 0
    %221 = vmatprep.subr.bf16.mxu0 0
    %222 = vmatpush1.bf16.msra.mxu0 0
    %223 = vmatprep.subr.bf16.mxu0 0
    %224 = vmatpush1.bf16.msra.mxu0 0
    %225 = vmatprep.subr.bf16.mxu0 0
    %226 = vmatpush1.bf16.msra.mxu0 0
    %227 = vmatprep.subr.bf16.mxu0 0
    %228 = vmatpush1.bf16.msra.mxu0 0
    %229 = vmatprep.subr.bf16.mxu0 0
    %230 = vmatpush1.bf16.msra.mxu0 0
    %231 = vmatprep.subr.bf16.mxu0 0
    %232 = vmatpush1.bf16.msra.mxu0 0
    %233 = vmatprep.subr.bf16.mxu0 0
    %234 = vmatpush1.bf16.msra.mxu0 0
    %235 = vmatprep.subr.bf16.mxu0 0
    %236 = vmatpush1.bf16.msra.mxu0 0
    %237 = vmatprep.subr.bf16.mxu0 0
    %238 = vmatpush1.bf16.msra.mxu0 0
    %239 = vmatprep.mubr.bf16.mxu0 0
    %240 = vmatmul.mubr.bf16.gmra.mrb[0].mxu0 %v202
    %v241 = vpop.f32.mrb[0].mxu0
    %v242 = vadd.f32 %v165, %v241
    %v243 = vpop.f32.mrb[0].mxu0
    %v244 = vpop.f32.mrb[0].mxu0
    %v245 = vadd.f32 %v168, %v244
    %v246 = vpop.f32.mrb[0].mxu0
    %247 = vmatprep.mubr.bf16.mxu0 0
    %248 = vmatmul.mubr.bf16.gmra.mrb[0].mxu0 %v205
    %v249 = vpop.f32.mrb[0].mxu0
    %v250 = vadd.f32 %v173, %v249
    %v251 = vpop.f32.mrb[0].mxu0
    %v252 = vpop.f32.mrb[0].mxu0
    %v253 = vadd.f32 %v176, %v252
    %v254 = vpop.f32.mrb[0].mxu0
    %255 = vdwg.mxu0
    %v256 = vld [vmem:[%s0] sm:$0xe]
    %v257 = vld [vmem:[%s0 + $0x10] sm:$0xe]
    %vm262 = vcmask 1042432
    %vm263 = vcmask 1046532
    %vm264 = vmor %vm262, %vm263
    %v265 = vrot.slane %v256, 5
    %v266 = vrot.slane %v265, 4
    %v267 = vrot.slane %v40, 5
    %v268 = vsel %vm264, %v266, %v267
    %v269 = vrot.slane %v267, 4
    %v270 = vrot.slane %v47, 5
    %v271 = vsel %vm264, %v269, %v270
    %v272 = vrot.slane %v257, 5
    %v273 = vrot.slane %v272, 4
    %v274 = vrot.slane %v42, 5
    %v275 = vsel %vm264, %v273, %v274
    %v276 = vrot.slane %v274, 4
    %v277 = vrot.slane %v48, 5
    %v278 = vsel %vm264, %v276, %v277
    %s279 = scalar_lea.vmem [#allocation2], 32
    %v280 = vld [vmem:[%s279] sm:$0xf]
    %v281 = vld [vmem:[%s279 + $0x4] sm:$0xf]
    %v282 = vld [vmem:[%s279 + $0x8] sm:$0xf]
    %v283 = vld [vmem:[%s279 + $0xc] sm:$0xf]
    %v284 = vunpack.c.l.b16 %v268
    %v285 = vunpack.c.l.b16 %v271
    %v286 = vunpack.c.l.b16 %v275
    %v287 = vunpack.c.l.b16 %v278
    %v288 = vpack.c.b16 %v285, %v284
    %v289 = vpack.c.b16 %v287, %v286
    %v294 = vunpack.c.l.b16 %v280
    %v295 = vunpack.c.l.b16 %v281
    %v296 = vunpack.c.l.b16 %v282
    %v297 = vunpack.c.l.b16 %v283
    %v298 = vpack.c.b16 %v295, %v294
    %v299 = vpack.c.b16 %v297, %v296
    %v303 = vsel %vm123, %v288, 0
    %v306 = vsel %vm123, %v289, 0
    %308 = vmatprep.subr.bf16.mxu0 0
    %309 = vmatpush1.bf16.msra.mxu0 %v298
    %310 = vmatprep.subr.bf16.mxu0 0
    %311 = vmatpush1.bf16.msra.mxu0 %v299
    %312 = vmatprep.subr.bf16.mxu0 0
    %313 = vmatpush1.bf16.msra.mxu0 0
    %314 = vmatprep.subr.bf16.mxu0 0
    %315 = vmatpush1.bf16.msra.mxu0 0
    %316 = vmatprep.subr.bf16.mxu0 0
    %317 = vmatpush1.bf16.msra.mxu0 0
    %318 = vmatprep.subr.bf16.mxu0 0
    %319 = vmatpush1.bf16.msra.mxu0 0
    %320 = vmatprep.subr.bf16.mxu0 0
    %321 = vmatpush1.bf16.msra.mxu0 0
    %322 = vmatprep.subr.bf16.mxu0 0
    %323 = vmatpush1.bf16.msra.mxu0 0
    %324 = vmatprep.subr.bf16.mxu0 0
    %325 = vmatpush1.bf16.msra.mxu0 0
    %326 = vmatprep.subr.bf16.mxu0 0
    %327 = vmatpush1.bf16.msra.mxu0 0
    %328 = vmatprep.subr.bf16.mxu0 0
    %329 = vmatpush1.bf16.msra.mxu0 0
    %330 = vmatprep.subr.bf16.mxu0 0
    %331 = vmatpush1.bf16.msra.mxu0 0
    %332 = vmatprep.subr.bf16.mxu0 0
    %333 = vmatpush1.bf16.msra.mxu0 0
    %334 = vmatprep.subr.bf16.mxu0 0
    %335 = vmatpush1.bf16.msra.mxu0 0
    %336 = vmatprep.subr.bf16.mxu0 0
    %337 = vmatpush1.bf16.msra.mxu0 0
    %338 = vmatprep.subr.bf16.mxu0 0
    %339 = vmatpush1.bf16.msra.mxu0 0
    %340 = vmatprep.mubr.bf16.mxu0 0
    %341 = vmatmul.mubr.bf16.gmra.mrb[0].mxu0 %v303
    %v342 = vpop.f32.mrb[0].mxu0
    %v343 = vadd.f32 0.0, %v342
    %v344 = vpop.f32.mrb[0].mxu0
    %v345 = vpop.f32.mrb[0].mxu0
    %v346 = vadd.f32 0.0, %v345
    %v347 = vpop.f32.mrb[0].mxu0
    %348 = vmatprep.mubr.bf16.mxu0 0
    %349 = vmatmul.mubr.bf16.gmra.mrb[0].mxu0 %v306
    %v350 = vpop.f32.mrb[0].mxu0
    %v351 = vadd.f32 0.0, %v350
    %v352 = vpop.f32.mrb[0].mxu0
    %v353 = vpop.f32.mrb[0].mxu0
    %v354 = vadd.f32 0.0, %v353
    %v355 = vpop.f32.mrb[0].mxu0
    %356 = vdwg.mxu0
    %v357 = vadd.f32 %v242, %v343
    %v358 = vadd.f32 %v245, %v346
    %v359 = vadd.f32 %v250, %v351
    %v360 = vadd.f32 %v253, %v354
    %v361 = vld [vmem:[%s0 + $0x8] sm:$0x3]
    %v362 = vld [vmem:[%s0 + $0x18] sm:$0x3]
    %vm363 = vsmask.f32 2304
    %vm364 = vsmask.f32 6416
    %vm365 = vmor %vm363, %vm364
    %v367 = vshrl.u32 %v256, 16
    %v369 = vrot.slane %v367, 5
    %v370 = vshll.u32 %v256, 16
    %v372 = vrot.slane %v370, 6
    %v373 = vor.u32 %v369, %v372
    %v374 = vrot.slane %v373, 4
    %v375 = vrot.slane %v66, 5
    %v376 = vrot.slane %v62, 6
    %v377 = vor.u32 %v375, %v376
    %v378 = vsel %vm365, %v374, %v377
    %v379 = vrot.slane %v377, 4
    %v381 = vshrl.u32 %v361, 16
    %v383 = vrot.slane %v381, 5
    %v384 = vshll.u32 %v361, 16
    %v386 = vrot.slane %v384, 6
    %v387 = vor.u32 %v383, %v386
    %v388 = vsel %vm365, %v379, %v387
    %v390 = vshrl.u32 %v257, 16
    %v392 = vrot.slane %v390, 5
    %v393 = vshll.u32 %v257, 16
    %v395 = vrot.slane %v393, 6
    %v396 = vor.u32 %v392, %v395
    %v397 = vrot.slane %v396, 4
    %v398 = vrot.slane %v90, 5
    %v399 = vrot.slane %v86, 6
    %v400 = vor.u32 %v398, %v399
    %v401 = vsel %vm365, %v397, %v400
    %v402 = vrot.slane %v400, 4
    %v404 = vshrl.u32 %v362, 16
    %v406 = vrot.slane %v404, 5
    %v407 = vshll.u32 %v362, 16
    %v409 = vrot.slane %v407, 6
    %v410 = vor.u32 %v406, %v409
    %v411 = vsel %vm365, %v402, %v410
    %s412 = scalar_lea.vmem [#allocation2], 48
    %v413 = vld [vmem:[%s412] sm:$0xf]
    %v414 = vld [vmem:[%s412 + $0x4] sm:$0xf]
    %v415 = vld [vmem:[%s412 + $0x8] sm:$0xf]
    %v416 = vld [vmem:[%s412 + $0xc] sm:$0xf]
    %v417 = vunpack.c.l.b16 %v378
    %v418 = vunpack.c.l.b16 %v388
    %v419 = vunpack.c.l.b16 %v401
    %v420 = vunpack.c.l.b16 %v411
    %v421 = vpack.c.b16 %v418, %v417
    %v422 = vpack.c.b16 %v420, %v419
    %v427 = vunpack.c.l.b16 %v413
    %v428 = vunpack.c.l.b16 %v414
    %v429 = vunpack.c.l.b16 %v415
    %v430 = vunpack.c.l.b16 %v416
    %v431 = vpack.c.b16 %v428, %v427
    %v432 = vpack.c.b16 %v430, %v429
    %v436 = vsel %vm123, %v421, 0
    %v439 = vsel %vm123, %v422, 0
    %441 = vmatprep.subr.bf16.mxu0 0
    %442 = vmatpush1.bf16.msra.mxu0 %v431
    %443 = vmatprep.subr.bf16.mxu0 0
    %444 = vmatpush1.bf16.msra.mxu0 %v432
    %445 = vmatprep.subr.bf16.mxu0 0
    %446 = vmatpush1.bf16.msra.mxu0 0
    %447 = vmatprep.subr.bf16.mxu0 0
    %448 = vmatpush1.bf16.msra.mxu0 0
    %449 = vmatprep.subr.bf16.mxu0 0
    %450 = vmatpush1.bf16.msra.mxu0 0
    %451 = vmatprep.subr.bf16.mxu0 0
    %452 = vmatpush1.bf16.msra.mxu0 0
    %453 = vmatprep.subr.bf16.mxu0 0
    %454 = vmatpush1.bf16.msra.mxu0 0
    %455 = vmatprep.subr.bf16.mxu0 0
    %456 = vmatpush1.bf16.msra.mxu0 0
    %457 = vmatprep.subr.bf16.mxu0 0
    %458 = vmatpush1.bf16.msra.mxu0 0
    %459 = vmatprep.subr.bf16.mxu0 0
    %460 = vmatpush1.bf16.msra.mxu0 0
    %461 = vmatprep.subr.bf16.mxu0 0
    %462 = vmatpush1.bf16.msra.mxu0 0
    %463 = vmatprep.subr.bf16.mxu0 0
    %464 = vmatpush1.bf16.msra.mxu0 0
    %465 = vmatprep.subr.bf16.mxu0 0
    %466 = vmatpush1.bf16.msra.mxu0 0
    %467 = vmatprep.subr.bf16.mxu0 0
    %468 = vmatpush1.bf16.msra.mxu0 0
    %469 = vmatprep.subr.bf16.mxu0 0
    %470 = vmatpush1.bf16.msra.mxu0 0
    %471 = vmatprep.subr.bf16.mxu0 0
    %472 = vmatpush1.bf16.msra.mxu0 0
    %473 = vmatprep.mubr.bf16.mxu0 0
    %474 = vmatmul.mubr.bf16.gmra.mrb[0].mxu0 %v436
    %v475 = vpop.f32.mrb[0].mxu0
    %v476 = vadd.f32 0.0, %v475
    %v477 = vpop.f32.mrb[0].mxu0
    %v478 = vpop.f32.mrb[0].mxu0
    %v479 = vadd.f32 0.0, %v478
    %v480 = vpop.f32.mrb[0].mxu0
    %481 = vmatprep.mubr.bf16.mxu0 0
    %482 = vmatmul.mubr.bf16.gmra.mrb[0].mxu0 %v439
    %v483 = vpop.f32.mrb[0].mxu0
    %v484 = vadd.f32 0.0, %v483
    %v485 = vpop.f32.mrb[0].mxu0
    %v486 = vpop.f32.mrb[0].mxu0
    %v487 = vadd.f32 0.0, %v486
    %v488 = vpop.f32.mrb[0].mxu0
    %489 = vdwg.mxu0
    %v490 = vadd.f32 %v357, %v476
    %v491 = vadd.f32 %v358, %v479
    %v492 = vadd.f32 %v359, %v484
    %v493 = vadd.f32 %v360, %v487
    %v494 = vld [vmem:[%s0] sm:$0xc]
    %v495 = vld [vmem:[%s0 + $0x10] sm:$0xc]
    %vm500 = vcmask 1041408
    %vm501 = vcmask 1045508
    %vm502 = vmor %vm500, %vm501
    %v503 = vrot.slane %v494, 6
    %v504 = vrot.slane %v503, 4
    %v505 = vrot.slane %v40, 6
    %v506 = vsel %vm502, %v504, %v505
    %v507 = vrot.slane %v505, 4
    %v508 = vrot.slane %v361, 6
    %v509 = vsel %vm502, %v507, %v508
    %v510 = vrot.slane %v495, 6
    %v511 = vrot.slane %v510, 4
    %v512 = vrot.slane %v42, 6
    %v513 = vsel %vm502, %v511, %v512
    %v514 = vrot.slane %v512, 4
    %v515 = vrot.slane %v362, 6
    %v516 = vsel %vm502, %v514, %v515
    %s517 = scalar_lea.vmem [#allocation2], 64
    %v518 = vld [vmem:[%s517] sm:$0xf]
    %v519 = vld [vmem:[%s517 + $0x4] sm:$0xf]
    %v520 = vld [vmem:[%s517 + $0x8] sm:$0xf]
    %v521 = vld [vmem:[%s517 + $0xc] sm:$0xf]
    %v522 = vunpack.c.l.b16 %v506
    %v523 = vunpack.c.l.b16 %v509
    %v524 = vunpack.c.l.b16 %v513
    %v525 = vunpack.c.l.b16 %v516
    %v526 = vpack.c.b16 %v523, %v522
    %v527 = vpack.c.b16 %v525, %v524
    %v532 = vunpack.c.l.b16 %v518
    %v533 = vunpack.c.l.b16 %v519
    %v534 = vunpack.c.l.b16 %v520
    %v535 = vunpack.c.l.b16 %v521
    %v536 = vpack.c.b16 %v533, %v532
    %v537 = vpack.c.b16 %v535, %v534
    %v541 = vsel %vm123, %v526, 0
    %v544 = vsel %vm123, %v527, 0
    %546 = vmatprep.subr.bf16.mxu0 0
    %547 = vmatpush1.bf16.msra.mxu0 %v536
    %548 = vmatprep.subr.bf16.mxu0 0
    %549 = vmatpush1.bf16.msra.mxu0 %v537
    %550 = vmatprep.subr.bf16.mxu0 0
    %551 = vmatpush1.bf16.msra.mxu0 0
    %552 = vmatprep.subr.bf16.mxu0 0
    %553 = vmatpush1.bf16.msra.mxu0 0
    %554 = vmatprep.subr.bf16.mxu0 0
    %555 = vmatpush1.bf16.msra.mxu0 0
    %556 = vmatprep.subr.bf16.mxu0 0
    %557 = vmatpush1.bf16.msra.mxu0 0
    %558 = vmatprep.subr.bf16.mxu0 0
    %559 = vmatpush1.bf16.msra.mxu0 0
    %560 = vmatprep.subr.bf16.mxu0 0
    %561 = vmatpush1.bf16.msra.mxu0 0
    %562 = vmatprep.subr.bf16.mxu0 0
    %563 = vmatpush1.bf16.msra.mxu0 0
    %564 = vmatprep.subr.bf16.mxu0 0
    %565 = vmatpush1.bf16.msra.mxu0 0
    %566 = vmatprep.subr.bf16.mxu0 0
    %567 = vmatpush1.bf16.msra.mxu0 0
    %568 = vmatprep.subr.bf16.mxu0 0
    %569 = vmatpush1.bf16.msra.mxu0 0
    %570 = vmatprep.subr.bf16.mxu0 0
    %571 = vmatpush1.bf16.msra.mxu0 0
    %572 = vmatprep.subr.bf16.mxu0 0
    %573 = vmatpush1.bf16.msra.mxu0 0
    %574 = vmatprep.subr.bf16.mxu0 0
    %575 = vmatpush1.bf16.msra.mxu0 0
    %576 = vmatprep.subr.bf16.mxu0 0
    %577 = vmatpush1.bf16.msra.mxu0 0
    %578 = vmatprep.mubr.bf16.mxu0 0
    %579 = vmatmul.mubr.bf16.gmra.mrb[0].mxu0 %v541
    %v580 = vpop.f32.mrb[0].mxu0
    %v581 = vadd.f32 0.0, %v580
    %v582 = vpop.f32.mrb[0].mxu0
    %v583 = vpop.f32.mrb[0].mxu0
    %v584 = vadd.f32 0.0, %v583
    %v585 = vpop.f32.mrb[0].mxu0
    %586 = vmatprep.mubr.bf16.mxu0 0
    %587 = vmatmul.mubr.bf16.gmra.mrb[0].mxu0 %v544
    %v588 = vpop.f32.mrb[0].mxu0
    %v589 = vadd.f32 0.0, %v588
    %v590 = vpop.f32.mrb[0].mxu0
    %v591 = vpop.f32.mrb[0].mxu0
    %v592 = vadd.f32 0.0, %v591
    %v593 = vpop.f32.mrb[0].mxu0
    %594 = vdwg.mxu0
    %v595 = vadd.f32 %v490, %v581
    %v596 = vadd.f32 %v491, %v584
    %v597 = vadd.f32 %v492, %v589
    %v598 = vadd.f32 %v493, %v592
    %v599 = vld [vmem:[%s0 + $0x8] sm:$0x7]
    %v600 = vld [vmem:[%s0 + $0x18] sm:$0x7]
    %vm601 = vsmask.f32 1280
    %vm602 = vsmask.f32 5392
    %vm603 = vmor %vm601, %vm602
    %v605 = vshrl.u32 %v494, 16
    %v607 = vrot.slane %v605, 6
    %v608 = vshll.u32 %v494, 16
    %v610 = vrot.slane %v608, 7
    %v611 = vor.u32 %v607, %v610
    %v612 = vrot.slane %v611, 4
    %v613 = vrot.slane %v66, 6
    %v614 = vrot.slane %v62, 7
    %v615 = vor.u32 %v613, %v614
    %v616 = vsel %vm603, %v612, %v615
    %v617 = vrot.slane %v615, 4
    %v619 = vshrl.u32 %v599, 16
    %v621 = vrot.slane %v619, 6
    %v622 = vshll.u32 %v599, 16
    %v624 = vrot.slane %v622, 7
    %v625 = vor.u32 %v621, %v624
    %v626 = vsel %vm603, %v617, %v625
    %v628 = vshrl.u32 %v495, 16
    %v630 = vrot.slane %v628, 6
    %v631 = vshll.u32 %v495, 16
    %v633 = vrot.slane %v631, 7
    %v634 = vor.u32 %v630, %v633
    %v635 = vrot.slane %v634, 4
    %v636 = vrot.slane %v90, 6
    %v637 = vrot.slane %v86, 7
    %v638 = vor.u32 %v636, %v637
    %v639 = vsel %vm603, %v635, %v638
    %v640 = vrot.slane %v638, 4
    %v642 = vshrl.u32 %v600, 16
    %v644 = vrot.slane %v642, 6
    %v645 = vshll.u32 %v600, 16
    %v647 = vrot.slane %v645, 7
    %v648 = vor.u32 %v644, %v647
    %v649 = vsel %vm603, %v640, %v648
    %s650 = scalar_lea.vmem [#allocation2], 80
    %v651 = vld [vmem:[%s650] sm:$0xf]
    %v652 = vld [vmem:[%s650 + $0x4] sm:$0xf]
    %v653 = vld [vmem:[%s650 + $0x8] sm:$0xf]
    %v654 = vld [vmem:[%s650 + $0xc] sm:$0xf]
    %v655 = vunpack.c.l.b16 %v616
    %v656 = vunpack.c.l.b16 %v626
    %v657 = vunpack.c.l.b16 %v639
    %v658 = vunpack.c.l.b16 %v649
    %v659 = vpack.c.b16 %v656, %v655
    %v660 = vpack.c.b16 %v658, %v657
    %v665 = vunpack.c.l.b16 %v651
    %v666 = vunpack.c.l.b16 %v652
    %v667 = vunpack.c.l.b16 %v653
    %v668 = vunpack.c.l.b16 %v654
    %v669 = vpack.c.b16 %v666, %v665
    %v670 = vpack.c.b16 %v668, %v667
    %v674 = vsel %vm123, %v659, 0
    %v677 = vsel %vm123, %v660, 0
    %679 = vmatprep.subr.bf16.mxu0 0
    %680 = vmatpush1.bf16.msra.mxu0 %v669
    %681 = vmatprep.subr.bf16.mxu0 0
    %682 = vmatpush1.bf16.msra.mxu0 %v670
    %683 = vmatprep.subr.bf16.mxu0 0
    %684 = vmatpush1.bf16.msra.mxu0 0
    %685 = vmatprep.subr.bf16.mxu0 0
    %686 = vmatpush1.bf16.msra.mxu0 0
    %687 = vmatprep.subr.bf16.mxu0 0
    %688 = vmatpush1.bf16.msra.mxu0 0
    %689 = vmatprep.subr.bf16.mxu0 0
    %690 = vmatpush1.bf16.msra.mxu0 0
    %691 = vmatprep.subr.bf16.mxu0 0
    %692 = vmatpush1.bf16.msra.mxu0 0
    %693 = vmatprep.subr.bf16.mxu0 0
    %694 = vmatpush1.bf16.msra.mxu0 0
    %695 = vmatprep.subr.bf16.mxu0 0
    %696 = vmatpush1.bf16.msra.mxu0 0
    %697 = vmatprep.subr.bf16.mxu0 0
    %698 = vmatpush1.bf16.msra.mxu0 0
    %699 = vmatprep.subr.bf16.mxu0 0
    %700 = vmatpush1.bf16.msra.mxu0 0
    %701 = vmatprep.subr.bf16.mxu0 0
    %702 = vmatpush1.bf16.msra.mxu0 0
    %703 = vmatprep.subr.bf16.mxu0 0
    %704 = vmatpush1.bf16.msra.mxu0 0
    %705 = vmatprep.subr.bf16.mxu0 0
    %706 = vmatpush1.bf16.msra.mxu0 0
    %707 = vmatprep.subr.bf16.mxu0 0
    %708 = vmatpush1.bf16.msra.mxu0 0
    %709 = vmatprep.subr.bf16.mxu0 0
    %710 = vmatpush1.bf16.msra.mxu0 0
    %711 = vmatprep.mubr.bf16.mxu0 0
    %712 = vmatmul.mubr.bf16.gmra.mrb[0].mxu0 %v674
    %v713 = vpop.f32.mrb[0].mxu0
    %v714 = vadd.f32 0.0, %v713
    %v715 = vpop.f32.mrb[0].mxu0
    %v716 = vpop.f32.mrb[0].mxu0
    %v717 = vadd.f32 0.0, %v716
    %v718 = vpop.f32.mrb[0].mxu0
    %719 = vmatprep.mubr.bf16.mxu0 0
    %720 = vmatmul.mubr.bf16.gmra.mrb[0].mxu0 %v677
    %v721 = vpop.f32.mrb[0].mxu0
    %v722 = vadd.f32 0.0, %v721
    %v723 = vpop.f32.mrb[0].mxu0
    %v724 = vpop.f32.mrb[0].mxu0
    %v725 = vadd.f32 0.0, %v724
    %v726 = vpop.f32.mrb[0].mxu0
    %727 = vdwg.mxu0
    %v728 = vadd.f32 %v595, %v714
    %v729 = vadd.f32 %v596, %v717
    %v730 = vadd.f32 %v597, %v722
    %v731 = vadd.f32 %v598, %v725
    %v732 = vld [vmem:[%s0] sm:$0x8]
    %v733 = vld [vmem:[%s0 + $0x10] sm:$0x8]
    %vm738 = vcmask 1040384
    %vm739 = vcmask 1044484
    %vm740 = vmor %vm738, %vm739
    %v741 = vrot.slane %v732, 7
    %v742 = vrot.slane %v741, 4
    %v743 = vrot.slane %v40, 7
    %v744 = vsel %vm740, %v742, %v743
    %v745 = vrot.slane %v743, 4
    %v746 = vrot.slane %v599, 7
    %v747 = vsel %vm740, %v745, %v746
    %v748 = vrot.slane %v733, 7
    %v749 = vrot.slane %v748, 4
    %v750 = vrot.slane %v42, 7
    %v751 = vsel %vm740, %v749, %v750
    %v752 = vrot.slane %v750, 4
    %v753 = vrot.slane %v600, 7
    %v754 = vsel %vm740, %v752, %v753
    %s755 = scalar_lea.vmem [#allocation2], 96
    %v756 = vld [vmem:[%s755] sm:$0xf]
    %v757 = vld [vmem:[%s755 + $0x4] sm:$0xf]
    %v758 = vld [vmem:[%s755 + $0x8] sm:$0xf]
    %v759 = vld [vmem:[%s755 + $0xc] sm:$0xf]
    %v760 = vunpack.c.l.b16 %v744
    %v761 = vunpack.c.l.b16 %v747
    %v762 = vunpack.c.l.b16 %v751
    %v763 = vunpack.c.l.b16 %v754
    %v764 = vpack.c.b16 %v761, %v760
    %v765 = vpack.c.b16 %v763, %v762
    %v770 = vunpack.c.l.b16 %v756
    %v771 = vunpack.c.l.b16 %v757
    %v772 = vunpack.c.l.b16 %v758
    %v773 = vunpack.c.l.b16 %v759
    %v774 = vpack.c.b16 %v771, %v770
    %v775 = vpack.c.b16 %v773, %v772
    %v779 = vsel %vm123, %v764, 0
    %v782 = vsel %vm123, %v765, 0
    %784 = vmatprep.subr.bf16.mxu0 0
    %785 = vmatpush1.bf16.msra.mxu0 %v774
    %786 = vmatprep.subr.bf16.mxu0 0
    %787 = vmatpush1.bf16.msra.mxu0 %v775
    %788 = vmatprep.subr.bf16.mxu0 0
    %789 = vmatpush1.bf16.msra.mxu0 0
    %790 = vmatprep.subr.bf16.mxu0 0
    %791 = vmatpush1.bf16.msra.mxu0 0
    %792 = vmatprep.subr.bf16.mxu0 0
    %793 = vmatpush1.bf16.msra.mxu0 0
    %794 = vmatprep.subr.bf16.mxu0 0
    %795 = vmatpush1.bf16.msra.mxu0 0
    %796 = vmatprep.subr.bf16.mxu0 0
    %797 = vmatpush1.bf16.msra.mxu0 0
    %798 = vmatprep.subr.bf16.mxu0 0
    %799 = vmatpush1.bf16.msra.mxu0 0
    %800 = vmatprep.subr.bf16.mxu0 0
    %801 = vmatpush1.bf16.msra.mxu0 0
    %802 = vmatprep.subr.bf16.mxu0 0
    %803 = vmatpush1.bf16.msra.mxu0 0
    %804 = vmatprep.subr.bf16.mxu0 0
    %805 = vmatpush1.bf16.msra.mxu0 0
    %806 = vmatprep.subr.bf16.mxu0 0
    %807 = vmatpush1.bf16.msra.mxu0 0
    %808 = vmatprep.subr.bf16.mxu0 0
    %809 = vmatpush1.bf16.msra.mxu0 0
    %810 = vmatprep.subr.bf16.mxu0 0
    %811 = vmatpush1.bf16.msra.mxu0 0
    %812 = vmatprep.subr.bf16.mxu0 0
    %813 = vmatpush1.bf16.msra.mxu0 0
    %814 = vmatprep.subr.bf16.mxu0 0
    %815 = vmatpush1.bf16.msra.mxu0 0
    %816 = vmatprep.mubr.bf16.mxu0 0
    %817 = vmatmul.mubr.bf16.gmra.mrb[0].mxu0 %v779
    %v818 = vpop.f32.mrb[0].mxu0
    %v819 = vadd.f32 0.0, %v818
    %v820 = vpop.f32.mrb[0].mxu0
    %v821 = vpop.f32.mrb[0].mxu0
    %v822 = vadd.f32 0.0, %v821
    %v823 = vpop.f32.mrb[0].mxu0
    %824 = vmatprep.mubr.bf16.mxu0 0
    %825 = vmatmul.mubr.bf16.gmra.mrb[0].mxu0 %v782
    %v826 = vpop.f32.mrb[0].mxu0
    %v827 = vadd.f32 0.0, %v826
    %v828 = vpop.f32.mrb[0].mxu0
    %v829 = vpop.f32.mrb[0].mxu0
    %v830 = vadd.f32 0.0, %v829
    %v831 = vpop.f32.mrb[0].mxu0
    %832 = vdwg.mxu0
    %v833 = vadd.f32 %v728, %v819
    %v834 = vadd.f32 %v729, %v822
    %v835 = vadd.f32 %v730, %v827
    %v836 = vadd.f32 %v731, %v830
    %v837 = vld [vmem:[%s0 + $0x8] sm:$0xf]
    %v838 = vld [vmem:[%s0 + $0x18] sm:$0xf]
    %vm839 = vsmask.f32 256
    %vm840 = vsmask.f32 4368
    %vm841 = vmor %vm839, %vm840
    %v843 = vshrl.u32 %v732, 16
    %v845 = vrot.slane %v843, 7
    %v846 = vrot.slane %v845, 4
    %v847 = vrot.slane %v66, 7
    %v848 = vor.u32 %v847, %v62
    %v849 = vsel %vm841, %v846, %v848
    %v850 = vrot.slane %v847, 4
    %v852 = vshrl.u32 %v837, 16
    %v854 = vrot.slane %v852, 7
    %v855 = vshll.u32 %v837, 16
    %v857 = vor.u32 %v854, %v855
    %v858 = vsel %vm841, %v850, %v857
    %v860 = vshrl.u32 %v733, 16
    %v862 = vrot.slane %v860, 7
    %v863 = vrot.slane %v862, 4
    %v864 = vrot.slane %v90, 7
    %v865 = vor.u32 %v864, %v86
    %v866 = vsel %vm841, %v863, %v865
    %v867 = vrot.slane %v864, 4
    %v869 = vshrl.u32 %v838, 16
    %v871 = vrot.slane %v869, 7
    %v872 = vshll.u32 %v838, 16
    %v874 = vor.u32 %v871, %v872
    %v875 = vsel %vm841, %v867, %v874
    %s876 = scalar_lea.vmem [#allocation2], 112
    %v877 = vld [vmem:[%s876] sm:$0xf]
    %v878 = vld [vmem:[%s876 + $0x4] sm:$0xf]
    %v879 = vld [vmem:[%s876 + $0x8] sm:$0xf]
    %v880 = vld [vmem:[%s876 + $0xc] sm:$0xf]
    %v881 = vunpack.c.l.b16 %v849
    %v882 = vunpack.c.l.b16 %v858
    %v883 = vunpack.c.l.b16 %v866
    %v884 = vunpack.c.l.b16 %v875
    %v885 = vpack.c.b16 %v882, %v881
    %v886 = vpack.c.b16 %v884, %v883
    %v891 = vunpack.c.l.b16 %v877
    %v892 = vunpack.c.l.b16 %v878
    %v893 = vunpack.c.l.b16 %v879
    %v894 = vunpack.c.l.b16 %v880
    %v895 = vpack.c.b16 %v892, %v891
    %v896 = vpack.c.b16 %v894, %v893
    %v900 = vsel %vm123, %v885, 0
    %v903 = vsel %vm123, %v886, 0
    %905 = vmatprep.subr.bf16.mxu0 0
    %906 = vmatpush1.bf16.msra.mxu0 %v895
    %907 = vmatprep.subr.bf16.mxu0 0
    %908 = vmatpush1.bf16.msra.mxu0 %v896
    %909 = vmatprep.subr.bf16.mxu0 0
    %910 = vmatpush1.bf16.msra.mxu0 0
    %911 = vmatprep.subr.bf16.mxu0 0
    %912 = vmatpush1.bf16.msra.mxu0 0
    %913 = vmatprep.subr.bf16.mxu0 0
    %914 = vmatpush1.bf16.msra.mxu0 0
    %915 = vmatprep.subr.bf16.mxu0 0
    %916 = vmatpush1.bf16.msra.mxu0 0
    %917 = vmatprep.subr.bf16.mxu0 0
    %918 = vmatpush1.bf16.msra.mxu0 0
    %919 = vmatprep.subr.bf16.mxu0 0
    %920 = vmatpush1.bf16.msra.mxu0 0
    %921 = vmatprep.subr.bf16.mxu0 0
    %922 = vmatpush1.bf16.msra.mxu0 0
    %923 = vmatprep.subr.bf16.mxu0 0
    %924 = vmatpush1.bf16.msra.mxu0 0
    %925 = vmatprep.subr.bf16.mxu0 0
    %926 = vmatpush1.bf16.msra.mxu0 0
    %927 = vmatprep.subr.bf16.mxu0 0
    %928 = vmatpush1.bf16.msra.mxu0 0
    %929 = vmatprep.subr.bf16.mxu0 0
    %930 = vmatpush1.bf16.msra.mxu0 0
    %931 = vmatprep.subr.bf16.mxu0 0
    %932 = vmatpush1.bf16.msra.mxu0 0
    %933 = vmatprep.subr.bf16.mxu0 0
    %934 = vmatpush1.bf16.msra.mxu0 0
    %935 = vmatprep.subr.bf16.mxu0 0
    %936 = vmatpush1.bf16.msra.mxu0 0
    %937 = vmatprep.mubr.bf16.mxu0 0
    %938 = vmatmul.mubr.bf16.gmra.mrb[0].mxu0 %v900
    %v939 = vpop.f32.mrb[0].mxu0
    %v940 = vadd.f32 0.0, %v939
    %v941 = vpop.f32.mrb[0].mxu0
    %v942 = vpop.f32.mrb[0].mxu0
    %v943 = vadd.f32 0.0, %v942
    %v944 = vpop.f32.mrb[0].mxu0
    %945 = vmatprep.mubr.bf16.mxu0 0
    %946 = vmatmul.mubr.bf16.gmra.mrb[0].mxu0 %v903
    %v947 = vpop.f32.mrb[0].mxu0
    %v948 = vadd.f32 0.0, %v947
    %v949 = vpop.f32.mrb[0].mxu0
    %v950 = vpop.f32.mrb[0].mxu0
    %v951 = vadd.f32 0.0, %v950
    %v952 = vpop.f32.mrb[0].mxu0
    %953 = vdwg.mxu0
    %v954 = vadd.f32 %v833, %v940
    %v955 = vadd.f32 %v834, %v943
    %v956 = vadd.f32 %v835, %v948
    %v957 = vadd.f32 %v836, %v951
    %s958 = scalar_lea.vmem [#allocation2], 128
    %v959 = vld [vmem:[%s958] sm:$0xf]
    %v960 = vld [vmem:[%s958 + $0x4] sm:$0xf]
    %v961 = vld [vmem:[%s958 + $0x8] sm:$0xf]
    %v962 = vld [vmem:[%s958 + $0xc] sm:$0xf]
    %v965 = vunpack.c.l.b16 %v837
    %v966 = vunpack.c.l.b16 %v838
    %v967 = vpack.c.b16 %v965, %v184
    %v968 = vpack.c.b16 %v966, %v186
    %v973 = vunpack.c.l.b16 %v959
    %v974 = vunpack.c.l.b16 %v960
    %v975 = vunpack.c.l.b16 %v961
    %v976 = vunpack.c.l.b16 %v962
    %v977 = vpack.c.b16 %v974, %v973
    %v978 = vpack.c.b16 %v976, %v975
    %v982 = vsel %vm123, %v967, 0
    %v985 = vsel %vm123, %v968, 0
    %987 = vmatprep.subr.bf16.mxu0 0
    %988 = vmatpush1.bf16.msra.mxu0 %v977
    %989 = vmatprep.subr.bf16.mxu0 0
    %990 = vmatpush1.bf16.msra.mxu0 %v978
    %991 = vmatprep.subr.bf16.mxu0 0
    %992 = vmatpush1.bf16.msra.mxu0 0
    %993 = vmatprep.subr.bf16.mxu0 0
    %994 = vmatpush1.bf16.msra.mxu0 0
    %995 = vmatprep.subr.bf16.mxu0 0
    %996 = vmatpush1.bf16.msra.mxu0 0
    %997 = vmatprep.subr.bf16.mxu0 0
    %998 = vmatpush1.bf16.msra.mxu0 0
    %999 = vmatprep.subr.bf16.mxu0 0
    %1000 = vmatpush1.bf16.msra.mxu0 0
    %1001 = vmatprep.subr.bf16.mxu0 0
    %1002 = vmatpush1.bf16.msra.mxu0 0
    %1003 = vmatprep.subr.bf16.mxu0 0
    %1004 = vmatpush1.bf16.msra.mxu0 0
    %1005 = vmatprep.subr.bf16.mxu0 0
    %1006 = vmatpush1.bf16.msra.mxu0 0
    %1007 = vmatprep.subr.bf16.mxu0 0
    %1008 = vmatpush1.bf16.msra.mxu0 0
    %1009 = vmatprep.subr.bf16.mxu0 0
    %1010 = vmatpush1.bf16.msra.mxu0 0
    %1011 = vmatprep.subr.bf16.mxu0 0
    %1012 = vmatpush1.bf16.msra.mxu0 0
    %1013 = vmatprep.subr.bf16.mxu0 0
    %1014 = vmatpush1.bf16.msra.mxu0 0
    %1015 = vmatprep.subr.bf16.mxu0 0
    %1016 = vmatpush1.bf16.msra.mxu0 0
    %1017 = vmatprep.subr.bf16.mxu0 0
    %1018 = vmatpush1.bf16.msra.mxu0 0
    %1019 = vmatprep.mubr.bf16.mxu0 0
    %1020 = vmatmul.mubr.bf16.gmra.mrb[0].mxu0 %v982
    %v1021 = vpop.f32.mrb[0].mxu0
    %v1022 = vadd.f32 0.0, %v1021
    %v1023 = vpop.f32.mrb[0].mxu0
    %v1024 = vpop.f32.mrb[0].mxu0
    %v1025 = vadd.f32 0.0, %v1024
    %v1026 = vpop.f32.mrb[0].mxu0
    %1027 = vmatprep.mubr.bf16.mxu0 0
    %1028 = vmatmul.mubr.bf16.gmra.mrb[0].mxu0 %v985
    %v1029 = vpop.f32.mrb[0].mxu0
    %v1030 = vadd.f32 0.0, %v1029
    %v1031 = vpop.f32.mrb[0].mxu0
    %v1032 = vpop.f32.mrb[0].mxu0
    %v1033 = vadd.f32 0.0, %v1032
    %v1034 = vpop.f32.mrb[0].mxu0
    %1035 = vdwg.mxu0
    %v1036 = vadd.f32 %v954, %v1022
    %v1037 = vadd.f32 %v955, %v1025
    %v1038 = vadd.f32 %v956, %v1030
    %v1039 = vadd.f32 %v957, %v1033
    %v1040 = vld [vmem:[%s0 + $0x4] sm:$0xf]
    %v1041 = vld [vmem:[%s0 + $0x8] sm:$0xf]
    %v1042 = vld [vmem:[%s0 + $0xc] sm:$0x1]
    %v1043 = vld [vmem:[%s0 + $0x14] sm:$0xf]
    %v1044 = vld [vmem:[%s0 + $0x18] sm:$0xf]
    %v1045 = vld [vmem:[%s0 + $0x1c] sm:$0x1]
    %v1047 = vshrl.u32 %v1040, 16
    %v1049 = vrot.slane %v1047, 4
    %v1050 = vshll.u32 %v1040, 16
    %v1052 = vrot.slane %v1050, 5
    %v1053 = vor.u32 %v1049, %v1052
    %v1054 = vrot.slane %v1053, 4
    %v1056 = vshll.u32 %v1041, 16
    %v1058 = vrot.slane %v1056, 5
    %v1059 = vsel %vm51, %v1054, %v1058
    %v1060 = vshrl.u32 %v1041, 16
    %v1062 = vrot.slane %v1060, 4
    %v1063 = vor.u32 %v1062, %v1058
    %v1064 = vrot.slane %v1063, 4
    %v1066 = vshll.u32 %v1042, 16
    %v1068 = vrot.slane %v1066, 5
    %v1069 = vsel %vm51, %v1064, %v1068
    %v1071 = vshrl.u32 %v1043, 16
    %v1073 = vrot.slane %v1071, 4
    %v1074 = vshll.u32 %v1043, 16
    %v1076 = vrot.slane %v1074, 5
    %v1077 = vor.u32 %v1073, %v1076
    %v1078 = vrot.slane %v1077, 4
    %v1080 = vshll.u32 %v1044, 16
    %v1082 = vrot.slane %v1080, 5
    %v1083 = vsel %vm51, %v1078, %v1082
    %v1084 = vshrl.u32 %v1044, 16
    %v1086 = vrot.slane %v1084, 4
    %v1087 = vor.u32 %v1086, %v1082
    %v1088 = vrot.slane %v1087, 4
    %v1090 = vshll.u32 %v1045, 16
    %v1092 = vrot.slane %v1090, 5
    %v1093 = vsel %vm51, %v1088, %v1092
    %s1094 = scalar_lea.vmem [#allocation2], 144
    %v1095 = vld [vmem:[%s1094] sm:$0xf]
    %v1096 = vld [vmem:[%s1094 + $0x4] sm:$0xf]
    %v1097 = vld [vmem:[%s1094 + $0x8] sm:$0xf]
    %v1098 = vld [vmem:[%s1094 + $0xc] sm:$0xf]
    %v1099 = vunpack.c.l.b16 %v1059
    %v1100 = vunpack.c.l.b16 %v1069
    %v1101 = vunpack.c.l.b16 %v1083
    %v1102 = vunpack.c.l.b16 %v1093
    %v1103 = vpack.c.b16 %v1100, %v1099
    %v1104 = vpack.c.b16 %v1102, %v1101
    %v1109 = vunpack.c.l.b16 %v1095
    %v1110 = vunpack.c.l.b16 %v1096
    %v1111 = vunpack.c.l.b16 %v1097
    %v1112 = vunpack.c.l.b16 %v1098
    %v1113 = vpack.c.b16 %v1110, %v1109
    %v1114 = vpack.c.b16 %v1112, %v1111
    %v1118 = vsel %vm123, %v1103, 0
    %v1121 = vsel %vm123, %v1104, 0
    %1123 = vmatprep.subr.bf16.mxu0 0
    %1124 = vmatpush1.bf16.msra.mxu0 %v1113
    %1125 = vmatprep.subr.bf16.mxu0 0
    %1126 = vmatpush1.bf16.msra.mxu0 %v1114
    %1127 = vmatprep.subr.bf16.mxu0 0
    %1128 = vmatpush1.bf16.msra.mxu0 0
    %1129 = vmatprep.subr.bf16.mxu0 0
    %1130 = vmatpush1.bf16.msra.mxu0 0
    %1131 = vmatprep.subr.bf16.mxu0 0
    %1132 = vmatpush1.bf16.msra.mxu0 0
    %1133 = vmatprep.subr.bf16.mxu0 0
    %1134 = vmatpush1.bf16.msra.mxu0 0
    %1135 = vmatprep.subr.bf16.mxu0 0
    %1136 = vmatpush1.bf16.msra.mxu0 0
    %1137 = vmatprep.subr.bf16.mxu0 0
    %1138 = vmatpush1.bf16.msra.mxu0 0
    %1139 = vmatprep.subr.bf16.mxu0 0
    %1140 = vmatpush1.bf16.msra.mxu0 0
    %1141 = vmatprep.subr.bf16.mxu0 0
    %1142 = vmatpush1.bf16.msra.mxu0 0
    %1143 = vmatprep.subr.bf16.mxu0 0
    %1144 = vmatpush1.bf16.msra.mxu0 0
    %1145 = vmatprep.subr.bf16.mxu0 0
    %1146 = vmatpush1.bf16.msra.mxu0 0
    %1147 = vmatprep.subr.bf16.mxu0 0
    %1148 = vmatpush1.bf16.msra.mxu0 0
    %1149 = vmatprep.subr.bf16.mxu0 0
    %1150 = vmatpush1.bf16.msra.mxu0 0
    %1151 = vmatprep.subr.bf16.mxu0 0
    %1152 = vmatpush1.bf16.msra.mxu0 0
    %1153 = vmatprep.subr.bf16.mxu0 0
    %1154 = vmatpush1.bf16.msra.mxu0 0
    %1155 = vmatprep.mubr.bf16.mxu0 0
    %1156 = vmatmul.mubr.bf16.gmra.mrb[0].mxu0 %v1118
    %v1157 = vpop.f32.mrb[0].mxu0
    %v1158 = vadd.f32 0.0, %v1157
    %v1159 = vpop.f32.mrb[0].mxu0
    %v1160 = vpop.f32.mrb[0].mxu0
    %v1161 = vadd.f32 0.0, %v1160
    %v1162 = vpop.f32.mrb[0].mxu0
    %1163 = vmatprep.mubr.bf16.mxu0 0
    %1164 = vmatmul.mubr.bf16.gmra.mrb[0].mxu0 %v1121
    %v1165 = vpop.f32.mrb[0].mxu0
    %v1166 = vadd.f32 0.0, %v1165
    %v1167 = vpop.f32.mrb[0].mxu0
    %v1168 = vpop.f32.mrb[0].mxu0
    %v1169 = vadd.f32 0.0, %v1168
    %v1170 = vpop.f32.mrb[0].mxu0
    %1171 = vdwg.mxu0
    %v1172 = vadd.f32 %v1036, %v1158
    %v1173 = vadd.f32 %v1037, %v1161
    %v1174 = vadd.f32 %v1038, %v1166
    %v1175 = vadd.f32 %v1039, %v1169
    %v1176 = vld [vmem:[%s2] sm:$0x1]
    %v1178 = vlaneseq
    %v1179 = vshrl.u32 %v1178, 7
    %v1180 = vsub.s32 0, %v1179
    %v1181 = vrot.slane %v1176, %v1180
    %v1183 = vadd.f32 %v1172, %v1181
    %v1184 = vadd.f32 %v1173, %v1181
    %v1185 = vadd.f32 %v1174, %v1181
    %v1186 = vadd.f32 %v1175, %v1181
    %v1187 = vtanh.pop %v1183
    %v1188 = vtanh.pop %v1184
    %v1189 = vtanh.pop %v1185
    %v1190 = vtanh.pop %v1186
    %v1191 = vld [vmem:[%s3] sm:$0xff]
    %v1192 = vld [vmem:[%s3 + $0x8] sm:$0xff]
    %v1193 = vadd.f32 %v1187, %v1191
    %v1194 = vadd.f32 %v1188, %v1192
    %v1195 = vadd.f32 %v1189, %v1191
    %v1196 = vadd.f32 %v1190, %v1192
    %vm1197 = vcmask 392192
    %v1198 = vsel %vm1197, %v1193, -inf
    %v1199 = vsel %vm1197, %v1194, -inf
    %v1200 = vmax.f32 %v1198, %v1199
    %v1201 = vrot.slane %v1200, 4
    %v1202 = vmax.f32 %v1200, %v1201
    %v1203 = vrot.slane %v1202, 2
    %v1204 = vmax.f32 %v1202, %v1203
    %v1205 = vrot.slane %v1204, 1
    %v1206 = vmax.f32 %v1204, %v1205
    %v1207 = vsel %vm1197, %v1195, -inf
    %v1208 = vsel %vm1197, %v1196, -inf
    %v1209 = vmax.f32 %v1207, %v1208
    %v1210 = vrot.slane %v1209, 4
    %v1211 = vmax.f32 %v1209, %v1210
    %v1212 = vrot.slane %v1211, 2
    %v1213 = vmax.f32 %v1211, %v1212
    %v1214 = vrot.slane %v1213, 1
    %v1215 = vmax.f32 %v1213, %v1214
    %v1216 = vpack.c.bf16 %v1206, %v1206
    %v1217 = vpack.c.bf16 %v1215, %v1215
    %v1218 = vld [vmem:[%s4] sm:$0xf]
    %v1219 = vld [vmem:[%s4 + $0x4] sm:$0xf]
    %v1220 = vld [vmem:[%s4 + $0x8] sm:$0xf]
    %v1221 = vld [vmem:[%s4 + $0xc] sm:$0xf]
    %v1222 = vld [vmem:[%s4 + $0x10] sm:$0xf]
    %v1223 = vld [vmem:[%s4 + $0x14] sm:$0xf]
    %v1224 = vld [vmem:[%s5] sm:$0x1]
    %v1226 = vlaneseq
    %v1227 = vshrl.u32 %v1226, 7
    %v1228 = vsub.s32 0, %v1227
    %v1229 = vrot.slane %v1224, %v1228
    %v1233 = vunpack.c.l.b16 %v1216
    %v1234 = vunpack.c.l.b16 %v1217
    %vm1235 = vcmask 1041409
    %v1236 = vsel %vm1235, %v1234, %v1233
    %v1237 = vpack.c.b16 %v1236, %v1236
    %v1244 = vunpack.c.l.b16 %v1218
    %v1245 = vunpack.c.l.b16 %v1219
    %v1246 = vunpack.c.l.b16 %v1220
    %v1247 = vunpack.c.l.b16 %v1221
    %v1248 = vunpack.c.l.b16 %v1222
    %v1249 = vunpack.c.l.b16 %v1223
    %v1250 = vpack.c.b16 %v1245, %v1244
    %v1251 = vpack.c.b16 %v1247, %v1246
    %v1252 = vpack.c.b16 %v1249, %v1248
    %v1257 = vsel %vm1197, %v1237, 0
    %1259 = vmatprep.subr.bf16.mxu0 0
    %1260 = vmatpush1.bf16.msra.mxu0 %v1250
    %1261 = vmatprep.subr.bf16.mxu0 0
    %1262 = vmatpush1.bf16.msra.mxu0 %v1251
    %1263 = vmatprep.subr.bf16.mxu0 0
    %1264 = vmatpush1.bf16.msra.mxu0 %v1252
    %1265 = vmatprep.subr.bf16.mxu0 0
    %1266 = vmatpush1.bf16.msra.mxu0 0
    %1267 = vmatprep.subr.bf16.mxu0 0
    %1268 = vmatpush1.bf16.msra.mxu0 0
    %1269 = vmatprep.subr.bf16.mxu0 0
    %1270 = vmatpush1.bf16.msra.mxu0 0
    %1271 = vmatprep.subr.bf16.mxu0 0
    %1272 = vmatpush1.bf16.msra.mxu0 0
    %1273 = vmatprep.subr.bf16.mxu0 0
    %1274 = vmatpush1.bf16.msra.mxu0 0
    %1275 = vmatprep.subr.bf16.mxu0 0
    %1276 = vmatpush1.bf16.msra.mxu0 0
    %1277 = vmatprep.subr.bf16.mxu0 0
    %1278 = vmatpush1.bf16.msra.mxu0 0
    %1279 = vmatprep.subr.bf16.mxu0 0
    %1280 = vmatpush1.bf16.msra.mxu0 0
    %1281 = vmatprep.subr.bf16.mxu0 0
    %1282 = vmatpush1.bf16.msra.mxu0 0
    %1283 = vmatprep.subr.bf16.mxu0 0
    %1284 = vmatpush1.bf16.msra.mxu0 0
    %1285 = vmatprep.subr.bf16.mxu0 0
    %1286 = vmatpush1.bf16.msra.mxu0 0
    %1287 = vmatprep.subr.bf16.mxu0 0
    %1288 = vmatpush1.bf16.msra.mxu0 0
    %1289 = vmatprep.subr.bf16.mxu0 0
    %1290 = vmatpush1.bf16.msra.mxu0 0
    %1291 = vmatprep.mubr.bf16.mxu0 0
    %1292 = vmatmul.mubr.bf16.gmra.mrb[0].mxu0 %v1257
    %v1293 = vpop.f32.mrb[0].mxu0
    %v1294 = vadd.f32 %v1229, %v1293
    %v1295 = vpop.f32.mrb[0].mxu0
    %v1296 = vpop.f32.mrb[0].mxu0
    %v1297 = vpop.f32.mrb[0].mxu0
    %1298 = vdwg.mxu0
    %vm1299 = vcmask 1041408
    %v1300 = vsel %vm1299, %v1294, -inf
    %1301 = vmax.xlane.f32.xlu0 %v1300
    %v1302 = vpop.xlane.xlu0 %1301
    %v1303 = vsub.f32 %v1294, %v1302
    %v1304 = vmul.f32 %v1303, 1.442695
    %v1305 = vpow.pop %v1304
    %v1306 = vsel %vm1299, %v1305, 0.0
    %1307 = vadd.xlane.f32.xlu0 %v1306
    %v1308 = vpop.xlane.xlu0 %1307
    %v1309 = vlog2.pop %v1308
    %v1310 = vmul.f32 %v1309, 0.6931472
    %v1311 = vsub.f32 %v1303, %v1310
    %1312 = vst [vmem:[#allocation5] sm:$0x3] %v1311
    // Predicated region
    $region30: #{tpu_custom_call.1} parent=1 // pred_check
      _
    $region31: #{tpu_custom_call.1} parent=1 // pred_check_branch
      %1314 = sbr.rel (0) target = $region33
    $region32: #{tpu_custom_call.1} parent=1 // pred_region
      %s1316 = ssub.s32 32, 32
      %1317 = vsyncadd [#allocation4], %s1316
      %s1319 = sshll.u32 [#allocation5], 4
      %s1320 = int_to_ptr.vmem [resolvable:$true] %s1319
      %1322 = dma.vmem_to_hbm [thread:$0]  %s1320, 32, %s6, [#allocation4]
    $region33: #{tpu_custom_call.1} parent=1 // pred_fallthru
      _
    // Predicated region
    $region34: #{tpu_custom_call.1} parent=1 // pred_check
      _
    $region35: #{tpu_custom_call.1} parent=1 // pred_check_branch
      %1324 = sbr.rel (0) target = $region37
    $region36: #{tpu_custom_call.1} parent=1 // pred_region
      %1325 = dma.done [#allocation4], 32
    $region37: #{tpu_custom_call.1} parent=1 // pred_fallthru
      _
    %1326 = vsyncpa [#allocation3], 1
    %1327 = vsyncpa [#allocation4], 1

</llo_original>
